<compile_context>
chip_gen: v7x
topology: tpu7x:2x2x1
jax: 0.10.0
libtpu: 0.0.40
codegen_flags: <defaults>
</compile_context>

<pallas_src>
import functools

import jax
import jax.numpy as jnp
from jax.experimental import pallas as pl
from jax.experimental.pallas import tpu as pltpu

EPS = 1e-5
_VMEM_TILE_BUDGET = 24 * 1024 * 1024  # v7x-safe working-set budget for tile sizing


def _round_up(n, m):
    return ((n + m - 1) // m) * m


def _pick_row_tile(n, c, o, budget_bytes=_VMEM_TILE_BUDGET):
    """Largest power-of-two row tile whose double-buffered VMEM working set fits budget."""
    # VMEM layout pads the lane (last) dim to 128 regardless of the HBM shape.
    cl, ol = _round_up(c, 128), _round_up(o, 128)
    weight_bytes = 2 * _round_up(c, 8) * ol * 4   # folded weight (conservative 2x)
    tn = 2048
    while tn > 8 and 2 * tn * (cl + ol) * 4 + weight_bytes > budget_bytes:
        tn //= 2
    tn = max(tn, 8)
    return min(tn, n)   # == n (full dim) when n is small -> single block, no raggedness


# ----------------------------------------------------------------------------- kernels


def _stats_kernel(x_ref, sum_ref, sq_ref, *, n_rows, tn):
    # x_ref: (TN, C) tile of the flattened input; outputs: per-channel sum / sum-of-squares.
    i = pl.program_id(0)

    @pl.when(i == 0)
    def _():
        sum_ref[...] = jnp.zeros_like(sum_ref)
        sq_ref[...] = jnp.zeros_like(sq_ref)

    x = x_ref[...].astype(jnp.float32)
    if n_rows % tn:  # static: only emit masking code when the last tile is ragged
        rows_left = n_rows - i * tn
        row_ids = jax.lax.broadcasted_iota(jnp.int32, x.shape, 0)
        x = jnp.where(row_ids < rows_left, x, 0.0)   # select: safe even vs OOB garbage
    sum_ref[...] += jnp.sum(x, axis=0, keepdims=True)
    sq_ref[...] += jnp.sum(x * x, axis=0, keepdims=True)


def _proj_kernel(x_ref, w_ref, b_ref, o_ref):
    # x_ref: (TN, C)  w_ref: (C, O) folded weight  b_ref: (1, O) folded bias  o_ref: (TN, O)
    acc = jnp.dot(x_ref[...], w_ref[...], preferred_element_type=jnp.float32)
    o_ref[...] = (acc + b_ref[...]).astype(o_ref.dtype)


# ----------------------------------------------------------------------------- wrapper


@functools.partial(jax.jit, static_argnames=("row_tile",))
def linear_modality_encoder(x, gamma, beta, w_proj, *, row_tile=None):
    """x: (B, T, C) float32; gamma/beta: (C,); w_proj: (O, C) (PyTorch Linear layout)."""
    B, T, C = x.shape
    O = w_proj.shape[0]
    N = B * T

    TN = row_tile if row_tile is not None else _pick_row_tile(N, C, O)
    n_tiles = pl.cdiv(N, TN)

    x2d = x.reshape(N, C)   # contiguous reshape: free, no HBM copy, no padding

    Cl, Ol = _round_up(C, 128), _round_up(O, 128)   # VMEM lane-layout footprint only

    # ---- pass 1: per-channel sum / sum-of-squares (accumulator over the N grid) ----
    stats_vmem = 2 * TN * Cl * 4 + 8 * Cl * 4 + (4 << 20)
    sums, sqs = pl.pallas_call(
        functools.partial(_stats_kernel, n_rows=N, tn=TN),
        out_shape=(
            jax.ShapeDtypeStruct((1, C), jnp.float32),
            jax.ShapeDtypeStruct((1, C), jnp.float32),
        ),
        grid=(n_tiles,),
        in_specs=[pl.BlockSpec((TN, C), lambda i: (i, 0))],
        out_specs=(
            pl.BlockSpec((1, C), lambda i: (0, 0)),
            pl.BlockSpec((1, C), lambda i: (0, 0)),
        ),
        compiler_params=pltpu.CompilerParams(
            dimension_semantics=("arbitrary",),
            vmem_limit_bytes=int(min(stats_vmem, 64 << 20)),
        ),
    )(x2d)

    # ---- fold BatchNorm into the projection (tiny O(C*O) work, plain JAX) ----
    # One-pass variance (sum(x^2)/n - mean^2), clamped at 0; biased variance + eps, as BN.
    mean = sums / N
    var = jnp.maximum(sqs / N - mean * mean, 0.0)
    inv_std = jax.lax.rsqrt(var + EPS)

    s = gamma.astype(jnp.float32).reshape(1, C) * inv_std          # (1, C)
    w_t = w_proj.T.astype(jnp.float32)                             # (C, O)
    w_fold = (w_t * s.reshape(C, 1)).astype(x.dtype)               # (C, O)
    b_fold = (beta.astype(jnp.float32).reshape(1, C) - mean * s) @ w_t   # (1, O), f32
    # NOTE: on v6e/v7x, casting x2d / w_fold to bfloat16 here feeds the MXU at native
    # rate; kept f32 for exact parity with the f32 reference.

    # ---- pass 2: tiled matmul + broadcast bias (pure MXU hot loop) ----
    proj_vmem = (2 * TN * (Cl + Ol) * 4 + 2 * _round_up(C, 8) * Ol * 4
                 + 4 * Ol * 4 + (4 << 20))
    out = pl.pallas_call(
        _proj_kernel,
        out_shape=jax.ShapeDtypeStruct((N, O), x.dtype),
        grid=(n_tiles,),
        in_specs=[
            pl.BlockSpec((TN, C), lambda i: (i, 0)),   # activations: tiled over N
            pl.BlockSpec((C, O), lambda i: (0, 0)),    # folded weight: resident
            pl.BlockSpec((1, O), lambda i: (0, 0)),    # folded bias: resident
        ],
        out_specs=pl.BlockSpec((TN, O), lambda i: (i, 0)),
        compiler_params=pltpu.CompilerParams(
            dimension_semantics=("parallel",),
            vmem_limit_bytes=int(min(proj_vmem, 64 << 20)),
        ),
    )(x2d, w_fold, b_fold)

    return out.reshape(B, T, O)


# ----------------------------------------------------------------------------- reference


def _reference(x, gamma, beta, w_proj):
    # Pure-JAX mirror of the PyTorch forward (training-mode BatchNorm1d, biased variance).
    mean = jnp.mean(x, axis=(0, 1), keepdims=True)
    var = jnp.mean((x - mean) ** 2, axis=(0, 1), keepdims=True)
    y = (x - mean) / jnp.sqrt(var + EPS) * gamma + beta
    return jnp.einsum("btc,oc->bto", y, w_proj)


if __name__ == "__main__":
    B, T, C, O = 2, 8, 32, 64  # batch, seq, input_dim, output_dim

    key = jax.random.PRNGKey(0)
    kx, kw = jax.random.split(key)

    x = jax.random.normal(kx, (B, T, C), dtype=jnp.float32)

    # Parameter init mirroring PyTorch defaults:
    #   BatchNorm1d: weight=1, bias=0;  Linear(bias=False): scaled uniform draw.
    gamma = jnp.ones((C,), dtype=jnp.float32)
    beta = jnp.zeros((C,), dtype=jnp.float32)
    bound = 1.0 / jnp.sqrt(jnp.float32(C))
    w_proj = jax.random.uniform(kw, (O, C), minval=-bound, maxval=bound,
                                dtype=jnp.float32)

    out = linear_modality_encoder(x, gamma, beta, w_proj)
    out = jax.block_until_ready(out)

    ref = _reference(x, gamma, beta, w_proj)
    assert out.shape == (B, T, O)
    assert jnp.allclose(out, ref, atol=1e-4, rtol=1e-4), "mismatch vs reference"

    # TODO(synk): running_mean/running_var (eval-mode BatchNorm state) is not tracked;
    # this matches the training-mode forward only.

    print("KERNEL_OK")
</pallas_src>

<mosaic_0001>
module attributes {stable_mosaic.version = 11 : i64} {
  func.func @_stats_kernel(%arg0: i32, %arg1: memref<16x32xf32, #tpu.memory_space<vmem>>, %arg2: memref<1x32xf32, #tpu.memory_space<vmem>>, %arg3: memref<1x32xf32, #tpu.memory_space<vmem>>) attributes {dimension_semantics = [#tpu.dimension_semantics<arbitrary>], iteration_bounds = array<i64: 1>, scalar_prefetch = 0 : i64, scratch_operands = 0 : i64, tpu.core_type = #tpu.core_type<tc>, window_params = [{transform_indices = @transform_0, window_bounds = array<i64: 16, 32>}, {pipeline_mode = #tpu.pipeline_mode<synchronous>, transform_indices = @transform_1, window_bounds = array<i64: 1, 32>}, {pipeline_mode = #tpu.pipeline_mode<synchronous>, transform_indices = @transform_2, window_bounds = array<i64: 1, 32>}]} {
    %c0_i32 = arith.constant 0 : i32
    %0 = arith.cmpi eq, %arg0, %c0_i32 : i32
    %1 = arith.extui %0 : i1 to i32
    %c0_i32_0 = arith.constant 0 : i32
    %2 = arith.cmpi ne, %1, %c0_i32_0 : i32
    scf.if %2 {
      %cst_11 = arith.constant 0.000000e+00 : f32
      %15 = vector.broadcast %cst_11 : f32 to vector<1x32xf32>
      %c0_12 = arith.constant 0 : index
      %c0_13 = arith.constant 0 : index
      %16 = vector.load %arg2[%c0_12, %c0_13] : memref<1x32xf32, #tpu.memory_space<vmem>>, vector<1x32xf32>
      tpu.vector_store %arg2[%c0_12, %c0_13], %15 {strides = array<i32>} : memref<1x32xf32, #tpu.memory_space<vmem>>, vector<1x32xf32>,
      %cst_14 = arith.constant 0.000000e+00 : f32
      %17 = vector.broadcast %cst_14 : f32 to vector<1x32xf32>
      %c0_15 = arith.constant 0 : index
      %c0_16 = arith.constant 0 : index
      %18 = vector.load %arg3[%c0_15, %c0_16] : memref<1x32xf32, #tpu.memory_space<vmem>>, vector<1x32xf32>
      tpu.vector_store %arg3[%c0_15, %c0_16], %17 {strides = array<i32>} : memref<1x32xf32, #tpu.memory_space<vmem>>, vector<1x32xf32>,
    } else {
    }
    %c0 = arith.constant 0 : index
    %c0_1 = arith.constant 0 : index
    %3 = vector.load %arg1[%c0, %c0_1] : memref<16x32xf32, #tpu.memory_space<vmem>>, vector<16x32xf32>
    %c0_2 = arith.constant 0 : index
    %c0_3 = arith.constant 0 : index
    %4 = vector.load %arg2[%c0_2, %c0_3] : memref<1x32xf32, #tpu.memory_space<vmem>>, vector<1x32xf32>
    %cst = arith.constant dense<0.000000e+00> : vector<32xf32>
    %5 = vector.multi_reduction <add>, %3, %cst [0] : vector<16x32xf32> to vector<32xf32>
    %6 = vector.shape_cast %5 : vector<32xf32> to vector<1x32xf32>
    %7 = arith.addf %4, %6 : vector<1x32xf32>
    %c0_4 = arith.constant 0 : index
    %c0_5 = arith.constant 0 : index
    %8 = vector.load %arg2[%c0_4, %c0_5] : memref<1x32xf32, #tpu.memory_space<vmem>>, vector<1x32xf32>
    tpu.vector_store %arg2[%c0_4, %c0_5], %7 {strides = array<i32>} : memref<1x32xf32, #tpu.memory_space<vmem>>, vector<1x32xf32>,
    %c0_6 = arith.constant 0 : index
    %c0_7 = arith.constant 0 : index
    %9 = vector.load %arg3[%c0_6, %c0_7] : memref<1x32xf32, #tpu.memory_space<vmem>>, vector<1x32xf32>
    %10 = arith.mulf %3, %3 : vector<16x32xf32>
    %cst_8 = arith.constant dense<0.000000e+00> : vector<32xf32>
    %11 = vector.multi_reduction <add>, %10, %cst_8 [0] : vector<16x32xf32> to vector<32xf32>
    %12 = vector.shape_cast %11 : vector<32xf32> to vector<1x32xf32>
    %13 = arith.addf %9, %12 : vector<1x32xf32>
    %c0_9 = arith.constant 0 : index
    %c0_10 = arith.constant 0 : index
    %14 = vector.load %arg3[%c0_9, %c0_10] : memref<1x32xf32, #tpu.memory_space<vmem>>, vector<1x32xf32>
    tpu.vector_store %arg3[%c0_9, %c0_10], %13 {strides = array<i32>} : memref<1x32xf32, #tpu.memory_space<vmem>>, vector<1x32xf32>,
    return
  }
  func.func @transform_0(%arg0: i32) -> (i32, i32) {
    %c0_i32 = arith.constant 0 : i32
    %c0_i32_0 = arith.constant 0 : i32
    return %arg0, %c0_i32 : i32, i32
  }
  func.func @transform_1(%arg0: i32) -> (i32, i32) {
    %c0_i32 = arith.constant 0 : i32
    %c0_i32_0 = arith.constant 0 : i32
    %c0_i32_1 = arith.constant 0 : i32
    return %c0_i32, %c0_i32_0 : i32, i32
  }
  func.func @transform_2(%arg0: i32) -> (i32, i32) {
    %c0_i32 = arith.constant 0 : i32
    %c0_i32_0 = arith.constant 0 : i32
    %c0_i32_1 = arith.constant 0 : i32
    return %c0_i32, %c0_i32_0 : i32, i32
  }
}

module attributes {stable_mosaic.version = 11 : i64} {
  func.func @_proj_kernel(%arg0: i32, %arg1: memref<16x32xf32, #tpu.memory_space<vmem>>, %arg2: memref<32x64xf32, #tpu.memory_space<vmem>>, %arg3: memref<1x64xf32, #tpu.memory_space<vmem>>, %arg4: memref<16x64xf32, #tpu.memory_space<vmem>>) attributes {dimension_semantics = [#tpu.dimension_semantics<parallel>], iteration_bounds = array<i64: 1>, scalar_prefetch = 0 : i64, scratch_operands = 0 : i64, tpu.core_type = #tpu.core_type<tc>, window_params = [{transform_indices = @transform_0, window_bounds = array<i64: 16, 32>}, {pipeline_mode = #tpu.pipeline_mode<synchronous>, transform_indices = @transform_1, window_bounds = array<i64: 32, 64>}, {pipeline_mode = #tpu.pipeline_mode<synchronous>, transform_indices = @transform_2, window_bounds = array<i64: 1, 64>}, {transform_indices = @transform_3, window_bounds = array<i64: 16, 64>}]} {
    %c0 = arith.constant 0 : index
    %c0_0 = arith.constant 0 : index
    %0 = vector.load %arg1[%c0, %c0_0] : memref<16x32xf32, #tpu.memory_space<vmem>>, vector<16x32xf32>
    %c0_1 = arith.constant 0 : index
    %c0_2 = arith.constant 0 : index
    %1 = vector.load %arg2[%c0_1, %c0_2] : memref<32x64xf32, #tpu.memory_space<vmem>>, vector<32x64xf32>
    %cst = arith.constant dense<0.000000e+00> : vector<16x64xf32>
    %2 = tpu.matmul %0, %1, %cst {dimension_numbers = #tpu.dot_dimension_numbers<[1], [0], [0], [1], [0, 0, 1, 1], [], []>} : vector<16x32xf32>, vector<32x64xf32>, vector<16x64xf32> -> vector<16x64xf32>
    %c0_3 = arith.constant 0 : index
    %c0_4 = arith.constant 0 : index
    %3 = vector.load %arg3[%c0_3, %c0_4] : memref<1x64xf32, #tpu.memory_space<vmem>>, vector<1x64xf32>
    %4 = vector.broadcast %3 : vector<1x64xf32> to vector<16x64xf32>
    %5 = arith.addf %2, %4 : vector<16x64xf32>
    %c0_5 = arith.constant 0 : index
    %c0_6 = arith.constant 0 : index
    %6 = vector.load %arg4[%c0_5, %c0_6] : memref<16x64xf32, #tpu.memory_space<vmem>>, vector<16x64xf32>
    tpu.vector_store %arg4[%c0_5, %c0_6], %5 {strides = array<i32>} : memref<16x64xf32, #tpu.memory_space<vmem>>, vector<16x64xf32>,
    return
  }
  func.func @transform_0(%arg0: i32) -> (i32, i32) {
    %c0_i32 = arith.constant 0 : i32
    %c0_i32_0 = arith.constant 0 : i32
    return %arg0, %c0_i32 : i32, i32
  }
  func.func @transform_1(%arg0: i32) -> (i32, i32) {
    %c0_i32 = arith.constant 0 : i32
    %c0_i32_0 = arith.constant 0 : i32
    %c0_i32_1 = arith.constant 0 : i32
    return %c0_i32, %c0_i32_0 : i32, i32
  }
  func.func @transform_2(%arg0: i32) -> (i32, i32) {
    %c0_i32 = arith.constant 0 : i32
    %c0_i32_0 = arith.constant 0 : i32
    %c0_i32_1 = arith.constant 0 : i32
    return %c0_i32, %c0_i32_0 : i32, i32
  }
  func.func @transform_3(%arg0: i32) -> (i32, i32) {
    %c0_i32 = arith.constant 0 : i32
    %c0_i32_0 = arith.constant 0 : i32
    return %arg0, %c0_i32 : i32, i32
  }
}

</mosaic_0001>

<llo_original>
// kernel: linear_modality_encoder.2
$region0: #{linear_modality_encoder.2}
  #allocation0 [shape = 'u32[]', space=smem, size = 0x4, offset = 0x4, fixed_abs, tag = 'smem constant byte address 0x4 - core index']
  #allocation1 [shape = 'u32[144,128]{1,0:T(1,128)}', space=vmem, size = 0x12000, scoped, tag = 'internal scratch']
  %s0 = inlined_call_operand.hbm [shape: f32[16,32], index: 0, kind: input, shape index: {}]
  %s1 = inlined_call_operand.vmem [shape: f32[1,32], index: 1, kind: output, shape index: {0}]
  %s2 = inlined_call_operand.vmem [shape: f32[1,32], index: 2, kind: output, shape index: {1}]
  %3 = xla_tuple %s1, %s2
  %s4 = sld [smem:[#allocation0]]
  $region30: #{linear_modality_encoder.2} parent=0
    _
  %s6 = ssub.s32 1, %s4
  %s7 = scalar_select 0, %s6, %s4
  $region1: #{linear_modality_encoder.2} parent=0
    #allocation2 [shape = 'u8[8192]{0}', space=vmem, size = 0x2000, scoped, tag = 'input window, operand 0, single buffered']
    #allocation3 [shape = 's32[1]{0}', space=sflag, size = 0x4, scoped, tag = 'scoped memory for linear_modality_encoder.2']
    %8 = vsyncpa [#allocation3], 0
    // Predicated region
    $region2: #{linear_modality_encoder.2} parent=1 // pred_check
      _
    $region3: #{linear_modality_encoder.2} parent=1 // pred_check_branch
      %10 = sbr.rel (0) target = $region5
    $region4: #{linear_modality_encoder.2} parent=1 // pred_region
      %s12 = ssub.s32 256, 256
      %13 = vsyncadd [#allocation3], %s12
      %s14 = sshll.u32 [#allocation2], 4
      %s15 = int_to_ptr.vmem [resolvable:$true] %s14
      %20 = dma.hbm_to_vmem [thread:$0]  %s0, 256, %s15, [#allocation3], 128, 128, 8
    $region5: #{linear_modality_encoder.2} parent=1 // pred_fallthru
      _
    // Predicated region
    $region6: #{linear_modality_encoder.2} parent=1 // pred_check
      _
    $region7: #{linear_modality_encoder.2} parent=1 // pred_check_branch
      %22 = sbr.rel (0) target = $region9
    $region8: #{linear_modality_encoder.2} parent=1 // pred_region
      %23 = dma.done [#allocation3], 256
    $region9: #{linear_modality_encoder.2} parent=1 // pred_fallthru
      _
    %p24 = scmp.eq.s32.totalorder 0, 0
    // Predicated region
    $region10: #{linear_modality_encoder.2} parent=1 // pred_check
      %p25 = pneg %p24
    $region11: #{linear_modality_encoder.2} parent=1 // pred_check_branch
      %27 = sbr.rel (%p25) target = $region13
    $region12: #{linear_modality_encoder.2} parent=1 // pred_region
      %vm28 = vcmask 253952
      %29 = vst.msk [vmem:[%s1] sm:$0x1] %vm28, 0.0
      %30 = vst.msk [vmem:[%s2] sm:$0x1] %vm28, 0.0
    $region13: #{linear_modality_encoder.2} parent=1 // pred_fallthru
      _
    %v31 = vld [vmem:[#allocation2] sm:$0xff]
    %v32 = vld [vmem:[#allocation2 + $0x8] sm:$0xff]
    %v33 = vld [vmem:[%s1] sm:$0x1]
    %vm34 = vcmask 261120
    %v35 = vsel %vm34, %v31, 0.0
    %v36 = vsel %vm34, %v32, 0.0
    %v37 = vadd.f32 %v35, %v36
    %v38 = vrot.slane %v37, 4
    %v39 = vadd.f32 %v37, %v38
    %v40 = vrot.slane %v39, 2
    %v41 = vadd.f32 %v39, %v40
    %v42 = vrot.slane %v41, 1
    %v43 = vadd.f32 %v41, %v42
    %v44 = vadd.f32 %v33, %v43
    %vm45 = vcmask 253952
    %46 = vst.msk [vmem:[%s1] sm:$0x1] %vm45, %v44
    %v47 = vld [vmem:[%s2] sm:$0x1]
    %v48 = vmul.f32 %v31, %v31
    %v49 = vmul.f32 %v32, %v32
    %v50 = vsel %vm34, %v48, 0.0
    %v51 = vsel %vm34, %v49, 0.0
    %v52 = vadd.f32 %v50, %v51
    %v53 = vrot.slane %v52, 4
    %v54 = vadd.f32 %v52, %v53
    %v55 = vrot.slane %v54, 2
    %v56 = vadd.f32 %v54, %v55
    %v57 = vrot.slane %v56, 1
    %v58 = vadd.f32 %v56, %v57
    %v59 = vadd.f32 %v47, %v58
    %60 = vst.msk [vmem:[%s2] sm:$0x1] %vm45, %v59
    // Predicated region
    $region14: #{linear_modality_encoder.2} parent=1 // pred_check
      _
    $region15: #{linear_modality_encoder.2} parent=1 // pred_check_branch
      %62 = sbr.rel (0) target = $region17
    $region16: #{linear_modality_encoder.2} parent=1 // pred_region
      _
    $region17: #{linear_modality_encoder.2} parent=1 // pred_fallthru
      _
    // Predicated region
    $region18: #{linear_modality_encoder.2} parent=1 // pred_check
      _
    $region19: #{linear_modality_encoder.2} parent=1 // pred_check_branch
      %64 = sbr.rel (0) target = $region21
    $region20: #{linear_modality_encoder.2} parent=1 // pred_region
      _
    $region21: #{linear_modality_encoder.2} parent=1 // pred_fallthru
      _
    // Predicated region
    $region22: #{linear_modality_encoder.2} parent=1 // pred_check
      _
    $region23: #{linear_modality_encoder.2} parent=1 // pred_check_branch
      %66 = sbr.rel (0) target = $region25
    $region24: #{linear_modality_encoder.2} parent=1 // pred_region
      _
    $region25: #{linear_modality_encoder.2} parent=1 // pred_fallthru
      _
    // Predicated region
    $region26: #{linear_modality_encoder.2} parent=1 // pred_check
      _
    $region27: #{linear_modality_encoder.2} parent=1 // pred_check_branch
      %68 = sbr.rel (0) target = $region29
    $region28: #{linear_modality_encoder.2} parent=1 // pred_region
      _
    $region29: #{linear_modality_encoder.2} parent=1 // pred_fallthru
      _
    %69 = vsyncpa [#allocation3], 1

// kernel: linear_modality_encoder.3
$region0: #{linear_modality_encoder.3}
  #allocation0 [shape = 'u32[]', space=smem, size = 0x4, offset = 0x4, fixed_abs, tag = 'smem constant byte address 0x4 - core index']
  #allocation1 [shape = 'u32[144,128]{1,0:T(1,128)}', space=vmem, size = 0x12000, scoped, tag = 'internal scratch']
  %s0 = inlined_call_operand.vmem [shape: f32[16,32], index: 0, kind: input, shape index: {}]
  %s1 = inlined_call_operand.vmem [shape: f32[32,64], index: 1, kind: input, shape index: {}]
  %s2 = inlined_call_operand.vmem [shape: f32[1,64], index: 2, kind: input, shape index: {}]
  %s3 = inlined_call_operand.hbm [shape: f32[16,64], index: 3, kind: output, shape index: {}]
  %s4 = sld [smem:[#allocation0]]
  $region22: #{linear_modality_encoder.3} parent=0
    _
  %s6 = ssub.s32 1, %s4
  %s7 = scalar_select 0, %s6, %s4
  $region1: #{linear_modality_encoder.3} parent=0
    #allocation2 [shape = 'u8[8192]{0}', space=vmem, size = 0x2000, scoped, tag = 'output window, operand 0, single buffered']
    #allocation3 [shape = 's32[1]{0}', space=sflag, size = 0x4, scoped, tag = 'scoped memory for linear_modality_encoder.3']
    %8 = vsyncpa [#allocation3], 0
    // Predicated region
    $region2: #{linear_modality_encoder.3} parent=1 // pred_check
      _
    $region3: #{linear_modality_encoder.3} parent=1 // pred_check_branch
      %10 = sbr.rel (0) target = $region5
    $region4: #{linear_modality_encoder.3} parent=1 // pred_region
      _
    $region5: #{linear_modality_encoder.3} parent=1 // pred_fallthru
      _
    // Predicated region
    $region6: #{linear_modality_encoder.3} parent=1 // pred_check
      _
    $region7: #{linear_modality_encoder.3} parent=1 // pred_check_branch
      %12 = sbr.rel (0) target = $region9
    $region8: #{linear_modality_encoder.3} parent=1 // pred_region
      _
    $region9: #{linear_modality_encoder.3} parent=1 // pred_fallthru
      _
    // Predicated region
    $region10: #{linear_modality_encoder.3} parent=1 // pred_check
      _
    $region11: #{linear_modality_encoder.3} parent=1 // pred_check_branch
      %14 = sbr.rel (0) target = $region13
    $region12: #{linear_modality_encoder.3} parent=1 // pred_region
      _
    $region13: #{linear_modality_encoder.3} parent=1 // pred_fallthru
      _
    %v15 = vld [vmem:[%s0] sm:$0xff]
    %v16 = vld [vmem:[%s0 + $0x8] sm:$0xff]
    %v17 = vld [vmem:[%s1] sm:$0xff]
    %v18 = vld [vmem:[%s1 + $0x8] sm:$0xff]
    %v19 = vld [vmem:[%s1 + $0x10] sm:$0xff]
    %v20 = vld [vmem:[%s1 + $0x18] sm:$0xff]
    %v21 = vld [vmem:[%s2] sm:$0x1]
    %v23 = vlaneseq
    %v24 = vshrl.u32 %v23, 7
    %v25 = vsub.s32 0, %v24
    %v26 = vrot.slane %v21, %v25
    %vm28 = vcmask 261120
    %v30 = vsel %vm28, %v15, 0
    %v33 = vsel %vm28, %v16, 0
    %35 = vmatprep.subr.mxu0 0.0
    %36 = vmatpush1.msra.mxu0 %v17
    %37 = vmatprep.subr.mxu0 0.0
    %38 = vmatpush1.msra.mxu0 %v18
    %39 = vmatprep.subr.mxu0 0.0
    %40 = vmatpush1.msra.mxu0 %v19
    %41 = vmatprep.subr.mxu0 0.0
    %42 = vmatpush1.msra.mxu0 %v20
    %43 = vmatprep.subr.mxu0 0.0
    %44 = vmatpush1.msra.mxu0 0.0
    %45 = vmatprep.subr.mxu0 0.0
    %46 = vmatpush1.msra.mxu0 0.0
    %47 = vmatprep.subr.mxu0 0.0
    %48 = vmatpush1.msra.mxu0 0.0
    %49 = vmatprep.subr.mxu0 0.0
    %50 = vmatpush1.msra.mxu0 0.0
    %51 = vmatprep.subr.mxu0 0.0
    %52 = vmatpush1.msra.mxu0 0.0
    %53 = vmatprep.subr.mxu0 0.0
    %54 = vmatpush1.msra.mxu0 0.0
    %55 = vmatprep.subr.mxu0 0.0
    %56 = vmatpush1.msra.mxu0 0.0
    %57 = vmatprep.subr.mxu0 0.0
    %58 = vmatpush1.msra.mxu0 0.0
    %59 = vmatprep.subr.mxu0 0.0
    %60 = vmatpush1.msra.mxu0 0.0
    %61 = vmatprep.subr.mxu0 0.0
    %62 = vmatpush1.msra.mxu0 0.0
    %63 = vmatprep.subr.mxu0 0.0
    %64 = vmatpush1.msra.mxu0 0.0
    %65 = vmatprep.subr.mxu0 0.0
    %66 = vmatpush1.msra.mxu0 0.0
    %67 = vmatprep.subr.mxu0 0.0
    %68 = vmatpush1.msra.mxu0 0.0
    %69 = vmatprep.subr.mxu0 0.0
    %70 = vmatpush1.msra.mxu0 0.0
    %71 = vmatprep.subr.mxu0 0.0
    %72 = vmatpush1.msra.mxu0 0.0
    %73 = vmatprep.subr.mxu0 0.0
    %74 = vmatpush1.msra.mxu0 0.0
    %75 = vmatprep.subr.mxu0 0.0
    %76 = vmatpush1.msra.mxu0 0.0
    %77 = vmatprep.subr.mxu0 0.0
    %78 = vmatpush1.msra.mxu0 0.0
    %79 = vmatprep.subr.mxu0 0.0
    %80 = vmatpush1.msra.mxu0 0.0
    %81 = vmatprep.subr.mxu0 0.0
    %82 = vmatpush1.msra.mxu0 0.0
    %83 = vmatprep.subr.mxu0 0.0
    %84 = vmatpush1.msra.mxu0 0.0
    %85 = vmatprep.subr.mxu0 0.0
    %86 = vmatpush1.msra.mxu0 0.0
    %87 = vmatprep.subr.mxu0 0.0
    %88 = vmatpush1.msra.mxu0 0.0
    %89 = vmatprep.subr.mxu0 0.0
    %90 = vmatpush1.msra.mxu0 0.0
    %91 = vmatprep.subr.mxu0 0.0
    %92 = vmatpush1.msra.mxu0 0.0
    %93 = vmatprep.subr.mxu0 0.0
    %94 = vmatpush1.msra.mxu0 0.0
    %95 = vmatprep.subr.mxu0 0.0
    %96 = vmatpush1.msra.mxu0 0.0
    %97 = vmatprep.subr.mxu0 0.0
    %98 = vmatpush1.msra.mxu0 0.0
    %99 = vmatprep.mubr.f32.mxu0 0.0
    %100 = vmatmul.mubr.f32.gmra.mrb[0].mxu0 %v30
    %v101 = vpop.f32.mrb[0].mxu0
    %v102 = vadd.f32 %v26, %v101
    %v103 = vpop.f32.mrb[0].mxu0
    %104 = vmatprep.mubr.f32.mxu0 0.0
    %105 = vmatmul.mubr.f32.gmra.mrb[0].mxu0 %v33
    %v106 = vpop.f32.mrb[0].mxu0
    %v107 = vadd.f32 %v26, %v106
    %v108 = vpop.f32.mrb[0].mxu0
    %109 = vdwg.mxu0
    %vm110 = vcmask 523264
    %111 = vst.msk [vmem:[#allocation2] sm:$0xff] %vm110, %v102
    %112 = vst.msk [vmem:[#allocation2 + $0x8] sm:$0xff] %vm110, %v107
    // Predicated region
    $region14: #{linear_modality_encoder.3} parent=1 // pred_check
      _
    $region15: #{linear_modality_encoder.3} parent=1 // pred_check_branch
      %114 = sbr.rel (0) target = $region17
    $region16: #{linear_modality_encoder.3} parent=1 // pred_region
      %s116 = ssub.s32 256, 256
      %117 = vsyncadd [#allocation3], %s116
      %s118 = sshll.u32 [#allocation2], 4
      %s119 = int_to_ptr.vmem [resolvable:$true] %s118
      %124 = dma.vmem_to_hbm [thread:$0]  %s119, 256, %s3, [#allocation3], 128, 128, 8
    $region17: #{linear_modality_encoder.3} parent=1 // pred_fallthru
      _
    // Predicated region
    $region18: #{linear_modality_encoder.3} parent=1 // pred_check
      _
    $region19: #{linear_modality_encoder.3} parent=1 // pred_check_branch
      %126 = sbr.rel (0) target = $region21
    $region20: #{linear_modality_encoder.3} parent=1 // pred_region
      %127 = dma.done [#allocation3], 256
    $region21: #{linear_modality_encoder.3} parent=1 // pred_fallthru
      _
    %128 = vsyncpa [#allocation3], 1

</llo_original>
